<compile_context>
chip_gen: v7x
topology: tpu7x:2x2x1
jax: 0.10.0
libtpu: 0.0.40
codegen_flags: <defaults>
</compile_context>

<pallas_src>
import math
from functools import partial

import jax
import jax.numpy as jnp
from jax import lax
from jax.experimental import pallas as pl
from jax.experimental.pallas import tpu as pltpu


# ----------------------------- small helpers --------------------------------

def _round_up(x, m):
    return ((x + m - 1) // m) * m


def _vmem_budget_bytes():
    """~80% of this chip's per-core VMEM (fallback: 64 MiB, the v7x minimum)."""
    try:
        cap = int(pltpu.get_tpu_info().vmem_capacity_bytes)
    except Exception:
        cap = 64 * 1024 * 1024
    return int(cap * 0.8)


def _tn_candidates(hw):
    cands = [t for t in (2048, 1536, 1024, 768, 512, 384, 256, 128)
             if t <= hw and hw % t == 0]
    return cands if cands else [hw]          # single full-width strip fallback


def _pick_tn_full(hw, c, c_pad, budget, tn):
    """Largest strip width whose per-step VMEM footprint fits the budget."""
    resident = 2 * (4 * c_pad) * hw * 4            # double-buffered LHS block
    #   (NOTE: pipeline_mode=pl.Buffered(1) on the LHS spec would halve this on
    #    v7x; kept double-buffered here and accounted for in the estimate.)

    def need(t):
        return (resident
                + int(2.5 * 4 * hw * t)            # one-hot + fused temporaries
                + 4 * c_pad * t * 4                # taps
                + 2 * (2 + c) * t * 4              # double-buffered coords + out
                + (1 << 20))                       # slack

    for t in ([tn] if tn is not None else _tn_candidates(hw)):
        if need(t) <= budget:
            return t
    raise ValueError(
        f"BackwardWarp full-plane path does not fit VMEM (H*W={hw}, C={c}, "
        f"budget={budget}B); use the windowed path via max_flow=... instead.")


def _pick_tn_windowed(hw, h, w, c, c_pad, max_flow, budget, tn):
    mf = int(math.ceil(max_flow))

    def win_of(t):
        rows_span = -(-t // w) + 1                 # rows a flat strip can touch
        return min(h, rows_span + 2 * mf + 1)

    def need(t, win):
        return (4 * c_pad * win * w * 4            # single-buffered LHS window
                + int(2.5 * 4 * win * w * t)       # one-hot + fused temporaries
                + 4 * c_pad * t * 4                # taps
                + 2 * (2 + c) * t * 4              # double-buffered coords + out
                + (1 << 20))                       # slack

    for t in ([tn] if tn is not None else _tn_candidates(hw)):
        win = win_of(t)
        if need(t, win) <= budget:
            return t, win
    raise ValueError("BackwardWarp windowed path does not fit VMEM; reduce "
                     "max_flow, the strip width, or the image size.")


# -------------------------- in-kernel building blocks ------------------------

def _bilinear_pieces(coords, w):
    """coords: (2, TN) border-clamped absolute sample positions.

    Returns the four bilinear weights (each (1, TN)) and the flat pixel index
    of the (y0, x0) tap.  All in exact f32.
    """
    x = coords[0:1, :]
    y = coords[1:2, :]
    x0 = jnp.floor(x)
    y0 = jnp.floor(y)
    wx = x - x0                                    # in [0, 1)
    wy = y - y0
    w00 = (1.0 - wx) * (1.0 - wy)
    w01 = wx * (1.0 - wy)
    w10 = (1.0 - wx) * wy
    w11 = wx * wy
    idx0 = (y0 * w + x0).astype(jnp.int32)         # (1, TN)
    return w00, w01, w10, w11, idx0


def _gather_and_blend(lhs, idx_local, weights, k, c, c_pad, out_dtype):
    """ONE unit one-hot + ONE MXU matmul gathers all four bilinear taps.

    lhs        : (4*c_pad, K)  stacked plane + shifts (tap groups 8-aligned)
    idx_local  : (1, TN)       flat index of the (y0, x0) tap within [0, K)
    Returns (c, TN) blended output.
    """
    w00, w01, w10, w11 = weights
    tn = idx_local.shape[-1]
    kio = lax.broadcasted_iota(jnp.int32, (k, tn), 0)
    m0 = jnp.where(kio == idx_local, 1.0, 0.0)                     # exact 0/1 f32
    taps = jnp.dot(lhs, m0, preferred_element_type=jnp.float32)    # (4C', TN)
    # tap-group slices start at multiples of 8 sublanes -> no relayout
    out = (w00 * taps[0:c, :]
           + w01 * taps[c_pad:c_pad + c, :]
           + w10 * taps[2 * c_pad:2 * c_pad + c, :]
           + w11 * taps[3 * c_pad:3 * c_pad + c, :])
    return out.astype(out_dtype)


# --------------------------------- kernels -----------------------------------

def _warp_kernel_full(coords_ref, lhs_ref, out_ref, *, w, c, c_pad):
    """Full-plane reduction.

    coords_ref : (1, 2, TN)        clamped absolute sample coords for the strip
    lhs_ref    : (1, 4*C', H*W)    stacked plane + shifts (DMA'd once / batch)
    out_ref    : (1, C, TN)        lane-dense output strip
    """
    hw = lhs_ref.shape[-1]
    w00, w01, w10, w11, idx0 = _bilinear_pieces(coords_ref[0], w)
    out_ref[0] = _gather_and_blend(lhs_ref[0], idx0, (w00, w01, w10, w11),
                                   hw, c, c_pad, out_ref.dtype)


def _warp_kernel_windowed(rs_ref, coords_ref, lhs_hbm, out_ref, lhs_vmem, sem,
                          *, w, c, c_pad, win):
    """Reduced-K path: per-strip source-row window, fetched with a manual DMA.

    rs_ref     : (B, n_strips) SMEM  first source row of each strip's window
    coords_ref : (1, 2, TN)
    lhs_hbm    : (B, 4*C', H*W) in HBM (memory_space=pl.ANY)
    out_ref    : (1, C, TN)
    lhs_vmem   : (4*C', WIN*W)  VMEM scratch for the window
    """
    b = pl.program_id(0)
    j = pl.program_id(1)
    r0w = rs_ref[b, j] * w                         # flat start of the window
    # NOTE: this window fetch could be double-buffered (prefetch strip j+1's
    # window while computing strip j); the exposed DMA is small vs. compute.
    cp = pltpu.make_async_copy(lhs_hbm.at[b, :, pl.ds(r0w, win * w)],
                               lhs_vmem, sem)
    cp.start()
    cp.wait()
    w00, w01, w10, w11, idx0 = _bilinear_pieces(coords_ref[0], w)
    out_ref[0] = _gather_and_blend(lhs_vmem[...], idx0 - r0w,
                                   (w00, w01, w10, w11),
                                   win * w, c, c_pad, out_ref.dtype)


# ------------------------------ wrapper glue ---------------------------------

def _build_coords(flow, h, w):
    """(B, H, W, 2) flow -> (B, 2, H*W) border-clamped absolute coords (f32)."""
    b = flow.shape[0]
    col = jnp.arange(w, dtype=jnp.float32)[None, None, :]
    row = jnp.arange(h, dtype=jnp.float32)[None, :, None]
    x = jnp.clip(col + flow[..., 0].astype(jnp.float32), 0.0, float(w - 1))
    y = jnp.clip(row + flow[..., 1].astype(jnp.float32), 0.0, float(h - 1))
    return jnp.stack([x, y], axis=1).reshape(b, 2, h * w)


def _build_lhs(buffer_flat, w, c_pad):
    """(B, C, H*W) -> (B, 4*c_pad, H*W): plane + its +1 / +W / +W+1 shifts.

    Each tap group is padded to c_pad rows (8-sublane aligned).  Zero-filled
    shift tails can only be selected where the border clamp already makes the
    corresponding bilinear weight exactly 0, so they never contribute.
    """
    _, ch, _ = buffer_flat.shape

    def group(s):
        g = buffer_flat if s == 0 else jnp.pad(
            buffer_flat[:, :, s:], ((0, 0), (0, 0), (0, s)))
        if c_pad > ch:
            g = jnp.pad(g, ((0, 0), (0, c_pad - ch), (0, 0)))
        return g

    return jnp.concatenate([group(0), group(1), group(w), group(w + 1)], axis=1)


def backward_warp(buffer, flow_1_2, *, tn=None, max_flow=None):
    """Pallas TPU implementation of BackwardWarp.forward.

    buffer:   (B, C, H, W) float32
    flow_1_2: (B, H, W, 2) float32, (flow_x, flow_y) in pixels
    tn:       optional output-strip width (multiple of 128 dividing H*W)
    max_flow: optional static bound on |flow_y|; enables the reduced-K
              windowed path (exact only if the bound actually holds)
    returns:  (B, C, H, W), dtype of `buffer`
    """
    B, C, H, W = buffer.shape
    assert flow_1_2.shape == (B, H, W, 2)
    assert H >= 2 and W >= 2, "degenerate 1-pixel spatial axes not supported"
    HW = H * W
    c_pad = max(8, _round_up(C, 8))
    budget = _vmem_budget_bytes()

    if tn is not None:
        assert tn == HW or (tn % 128 == 0 and HW % tn == 0), \
            "tn must be a multiple of 128 dividing H*W (or equal to H*W)"

    coords = _build_coords(flow_1_2, H, W)                       # (B, 2, HW)
    lhs = _build_lhs(buffer.reshape(B, C, HW).astype(jnp.float32), W, c_pad)

    # Megacore: split on batch when possible so each core keeps the
    # one-LHS-DMA-per-batch revisit; only split strips when B == 1.
    dim_sem = ("parallel", "arbitrary") if B >= 2 else ("arbitrary", "parallel")

    if max_flow is None:
        tn = _pick_tn_full(HW, C, c_pad, budget, tn)
        n_strips = HW // tn
        k_red = HW
        grid_spec = pltpu.PrefetchScalarGridSpec(
            num_scalar_prefetch=0,
            grid=(B, n_strips),                    # strips innermost: LHS block
            in_specs=[                             #   revisited => 1 DMA / batch
                pl.BlockSpec((1, 2, tn), lambda b, j: (b, 0, j)),
                pl.BlockSpec((1, 4 * c_pad, HW), lambda b, j: (b, 0, 0)),
            ],
            out_specs=pl.BlockSpec((1, C, tn), lambda b, j: (b, 0, j)),
        )
        kernel = partial(_warp_kernel_full, w=W, c=C, c_pad=c_pad)
        operands = (coords, lhs)
    else:
        assert max_flow >= 0.0
        tn, win = _pick_tn_windowed(HW, H, W, C, c_pad, float(max_flow),
                                    budget, tn)
        n_strips = HW // tn
        k_red = win * W
        # Per-(batch, strip) first source row of the window, from actual data.
        y0 = jnp.floor(coords[:, 1, :]).astype(jnp.int32)        # (B, HW)
        row_start = jnp.min(y0.reshape(B, n_strips, tn), axis=-1)
        row_start = jnp.clip(row_start, 0, H - win).astype(jnp.int32)
        grid_spec = pltpu.PrefetchScalarGridSpec(
            num_scalar_prefetch=1,
            grid=(B, n_strips),
            in_specs=[
                pl.BlockSpec((1, 2, tn), lambda b, j, rs: (b, 0, j)),
                pl.BlockSpec(memory_space=pl.ANY),   # stacked LHS stays in HBM
            ],
            out_specs=pl.BlockSpec((1, C, tn), lambda b, j, rs: (b, 0, j)),
            scratch_shapes=[
                pltpu.VMEM((4 * c_pad, win * W), jnp.float32),
                pltpu.SemaphoreType.DMA,
            ],
        )
        kernel = partial(_warp_kernel_windowed, w=W, c=C, c_pad=c_pad, win=win)
        operands = (row_start, coords, lhs)

    lhs_read = 4 * B * (4 * c_pad) * (HW if max_flow is None
                                      else k_red * n_strips)
    cost = pl.CostEstimate(
        flops=2 * (4 * c_pad) * k_red * tn * n_strips * B,
        transcendentals=0,
        bytes_accessed=lhs_read + 4 * B * HW * (2 + C),
    )

    out_flat = pl.pallas_call(
        kernel,
        out_shape=jax.ShapeDtypeStruct((B, C, HW), buffer.dtype),
        grid_spec=grid_spec,
        compiler_params=pltpu.CompilerParams(
            dimension_semantics=dim_sem,
            vmem_limit_bytes=budget,
        ),
        cost_estimate=cost,
    )(*operands)

    return out_flat.reshape(B, C, H, W)


# --------------------------- pure-JAX reference ------------------------------

def _reference_warp(buffer, flow):
    """Same math as grid_sample(align_corners=True, padding_mode='border')."""
    B, C, H, W = buffer.shape
    xx = jnp.arange(W, dtype=jnp.float32)[None, None, :]
    yy = jnp.arange(H, dtype=jnp.float32)[None, :, None]
    x = jnp.clip(xx + flow[..., 0], 0.0, W - 1.0)
    y = jnp.clip(yy + flow[..., 1], 0.0, H - 1.0)
    x0f = jnp.floor(x); y0f = jnp.floor(y)
    wx = x - x0f; wy = y - y0f
    x0 = x0f.astype(jnp.int32); y0 = y0f.astype(jnp.int32)
    x1 = jnp.minimum(x0 + 1, W - 1); y1 = jnp.minimum(y0 + 1, H - 1)
    bidx = jnp.arange(B)[:, None, None]

    def gather(yi, xi):
        return buffer[bidx, :, yi, xi]  # (B, H, W, C)

    v00 = gather(y0, x0); v01 = gather(y0, x1)
    v10 = gather(y1, x0); v11 = gather(y1, x1)
    wx = wx[..., None]; wy = wy[..., None]
    out = (v00 * (1 - wx) * (1 - wy) + v01 * wx * (1 - wy)
           + v10 * (1 - wx) * wy + v11 * wx * wy)
    return jnp.transpose(out, (0, 3, 1, 2))


# ----------------------------------- demo ------------------------------------

if __name__ == "__main__":
    key = jax.random.PRNGKey(0)
    k1, k2, k3, k4 = jax.random.split(key, 4)

    # --- full-plane path: B=2, C=4, 16x16, tn=128 -> 2 strips / batch --------
    B, C, H, W = 2, 4, 16, 16
    buffer = jax.random.normal(k1, (B, C, H, W), dtype=jnp.float32)
    flow = 3.0 * jax.random.normal(k2, (B, H, W, 2), dtype=jnp.float32)
    out = jax.block_until_ready(backward_warp(buffer, flow, tn=128))
    ref = jax.block_until_ready(_reference_warp(buffer, flow))
    assert out.shape == (B, C, H, W)
    err_full = float(jnp.max(jnp.abs(out - ref)))
    assert err_full < 1e-4, f"full-plane path mismatch vs reference: {err_full}"

    # --- windowed path: B=1, C=3, 32x32, |flow| <= 2 -> WIN=10 < H -----------
    B2, C2, H2, W2 = 1, 3, 32, 32
    buffer2 = jax.random.normal(k3, (B2, C2, H2, W2), dtype=jnp.float32)
    flow2 = jnp.clip(3.0 * jax.random.normal(k4, (B2, H2, W2, 2),
                                             dtype=jnp.float32), -2.0, 2.0)
    out2 = jax.block_until_ready(
        backward_warp(buffer2, flow2, tn=128, max_flow=2.0))
    ref2 = jax.block_until_ready(_reference_warp(buffer2, flow2))
    assert out2.shape == (B2, C2, H2, W2)
    err_win = float(jnp.max(jnp.abs(out2 - ref2)))
    assert err_win < 1e-4, f"windowed path mismatch vs reference: {err_win}"

    print("KERNEL_OK")
</pallas_src>

<mosaic_0001>
module attributes {stable_mosaic.version = 11 : i64} {
  func.func @_warp_kernel_full(%arg0: i32, %arg1: i32, %arg2: memref<1x2x128xf32, #tpu.memory_space<vmem>>, %arg3: memref<1x32x256xf32, #tpu.memory_space<vmem>>, %arg4: memref<1x4x128xf32, #tpu.memory_space<vmem>>) attributes {dimension_semantics = [#tpu.dimension_semantics<parallel>, #tpu.dimension_semantics<arbitrary>], iteration_bounds = array<i64: 2, 2>, scalar_prefetch = 0 : i64, scratch_operands = 0 : i64, tpu.core_type = #tpu.core_type<tc>, window_params = [{transform_indices = @transform_0, window_bounds = array<i64: 1, 2, 128>}, {transform_indices = @transform_1, window_bounds = array<i64: 1, 32, 256>}, {transform_indices = @transform_2, window_bounds = array<i64: 1, 4, 128>}]} {
    %c0 = arith.constant 0 : index
    %c0_0 = arith.constant 0 : index
    %c0_1 = arith.constant 0 : index
    %0 = vector.load %arg2[%c0, %c0_0, %c0_1] : memref<1x2x128xf32, #tpu.memory_space<vmem>>, vector<1x2x128xf32>
    %1 = vector.shape_cast %0 : vector<1x2x128xf32> to vector<2x128xf32>
    %2 = vector.extract_strided_slice %1 {offsets = [0, 0], sizes = [1, 128], strides = [1, 1]} : vector<2x128xf32> to vector<1x128xf32>
    %3 = vector.extract_strided_slice %1 {offsets = [1, 0], sizes = [1, 128], strides = [1, 1]} : vector<2x128xf32> to vector<1x128xf32>
    %4 = math.floor %2 : vector<1x128xf32>
    %5 = math.floor %3 : vector<1x128xf32>
    %6 = arith.subf %2, %4 : vector<1x128xf32>
    %7 = arith.subf %3, %5 : vector<1x128xf32>
    %cst = arith.constant 1.000000e+00 : f32
    %8 = vector.broadcast %cst : f32 to vector<1x128xf32>
    %9 = arith.subf %8, %6 : vector<1x128xf32>
    %cst_2 = arith.constant 1.000000e+00 : f32
    %10 = vector.broadcast %cst_2 : f32 to vector<1x128xf32>
    %11 = arith.subf %10, %7 : vector<1x128xf32>
    %12 = arith.mulf %9, %11 : vector<1x128xf32>
    %cst_3 = arith.constant 1.000000e+00 : f32
    %13 = vector.broadcast %cst_3 : f32 to vector<1x128xf32>
    %14 = arith.subf %13, %7 : vector<1x128xf32>
    %15 = arith.mulf %6, %14 : vector<1x128xf32>
    %cst_4 = arith.constant 1.000000e+00 : f32
    %16 = vector.broadcast %cst_4 : f32 to vector<1x128xf32>
    %17 = arith.subf %16, %6 : vector<1x128xf32>
    %18 = arith.mulf %17, %7 : vector<1x128xf32>
    %19 = arith.mulf %6, %7 : vector<1x128xf32>
    %cst_5 = arith.constant 1.600000e+01 : f32
    %20 = vector.broadcast %cst_5 : f32 to vector<1x128xf32>
    %21 = arith.mulf %5, %20 : vector<1x128xf32>
    %22 = arith.addf %21, %4 : vector<1x128xf32>
    %23 = arith.fptosi %22 : vector<1x128xf32> to vector<1x128xi32>
    %c0_6 = arith.constant 0 : index
    %c0_7 = arith.constant 0 : index
    %c0_8 = arith.constant 0 : index
    %24 = vector.load %arg3[%c0_6, %c0_7, %c0_8] : memref<1x32x256xf32, #tpu.memory_space<vmem>>, vector<1x32x256xf32>
    %25 = vector.shape_cast %24 : vector<1x32x256xf32> to vector<32x256xf32>
    %26 = tpu.iota {dimensions = array<i32: 0>} : vector<256x128xi32>
    %27 = vector.broadcast %23 : vector<1x128xi32> to vector<256x128xi32>
    %28 = arith.cmpi eq, %26, %27 : vector<256x128xi32>
    %cst_9 = arith.constant 1.000000e+00 : f32
    %cst_10 = arith.constant 0.000000e+00 : f32
    %29 = vector.broadcast %cst_9 : f32 to vector<256x128xf32>
    %30 = vector.broadcast %cst_10 : f32 to vector<256x128xf32>
    %31 = arith.select %28, %29, %30 : vector<256x128xi1>, vector<256x128xf32>
    %cst_11 = arith.constant dense<0.000000e+00> : vector<32x128xf32>
    %32 = tpu.matmul %25, %31, %cst_11 {dimension_numbers = #tpu.dot_dimension_numbers<[1], [0], [0], [1], [0, 0, 1, 1], [], []>} : vector<32x256xf32>, vector<256x128xf32>, vector<32x128xf32> -> vector<32x128xf32>
    %33 = vector.extract_strided_slice %32 {offsets = [0, 0], sizes = [4, 128], strides = [1, 1]} : vector<32x128xf32> to vector<4x128xf32>
    %34 = vector.broadcast %12 : vector<1x128xf32> to vector<4x128xf32>
    %35 = arith.mulf %34, %33 : vector<4x128xf32>
    %36 = vector.extract_strided_slice %32 {offsets = [8, 0], sizes = [4, 128], strides = [1, 1]} : vector<32x128xf32> to vector<4x128xf32>
    %37 = vector.broadcast %15 : vector<1x128xf32> to vector<4x128xf32>
    %38 = arith.mulf %37, %36 : vector<4x128xf32>
    %39 = arith.addf %35, %38 : vector<4x128xf32>
    %40 = vector.extract_strided_slice %32 {offsets = [16, 0], sizes = [4, 128], strides = [1, 1]} : vector<32x128xf32> to vector<4x128xf32>
    %41 = vector.broadcast %18 : vector<1x128xf32> to vector<4x128xf32>
    %42 = arith.mulf %41, %40 : vector<4x128xf32>
    %43 = arith.addf %39, %42 : vector<4x128xf32>
    %44 = vector.extract_strided_slice %32 {offsets = [24, 0], sizes = [4, 128], strides = [1, 1]} : vector<32x128xf32> to vector<4x128xf32>
    %45 = vector.broadcast %19 : vector<1x128xf32> to vector<4x128xf32>
    %46 = arith.mulf %45, %44 : vector<4x128xf32>
    %47 = arith.addf %43, %46 : vector<4x128xf32>
    %c0_12 = arith.constant 0 : index
    %c0_13 = arith.constant 0 : index
    %c0_14 = arith.constant 0 : index
    %48 = vector.load %arg4[%c0_12, %c0_13, %c0_14] : memref<1x4x128xf32, #tpu.memory_space<vmem>>, vector<1x4x128xf32>
    %49 = vector.shape_cast %48 : vector<1x4x128xf32> to vector<4x128xf32>
    %50 = vector.shape_cast %47 : vector<4x128xf32> to vector<1x4x128xf32>
    tpu.vector_store %arg4[%c0_12, %c0_13, %c0_14], %50 {strides = array<i32>} : memref<1x4x128xf32, #tpu.memory_space<vmem>>, vector<1x4x128xf32>,
    return
  }
  func.func @transform_0(%arg0: i32, %arg1: i32) -> (i32, i32, i32) {
    %c0_i32 = arith.constant 0 : i32
    %c0_i32_0 = arith.constant 0 : i32
    return %arg0, %c0_i32, %arg1 : i32, i32, i32
  }
  func.func @transform_1(%arg0: i32, %arg1: i32) -> (i32, i32, i32) {
    %c0_i32 = arith.constant 0 : i32
    %c0_i32_0 = arith.constant 0 : i32
    %c0_i32_1 = arith.constant 0 : i32
    return %arg0, %c0_i32, %c0_i32_0 : i32, i32, i32
  }
  func.func @transform_2(%arg0: i32, %arg1: i32) -> (i32, i32, i32) {
    %c0_i32 = arith.constant 0 : i32
    %c0_i32_0 = arith.constant 0 : i32
    return %arg0, %c0_i32, %arg1 : i32, i32, i32
  }
}

</mosaic_0001>

<llo_original>
// kernel: tpu_custom_call.1
$region0: #{tpu_custom_call.1}
  #allocation0 [shape = 'u32[]', space=smem, size = 0x4, offset = 0x4, fixed_abs, tag = 'smem constant byte address 0x4 - core index']
  #allocation1 [shape = 'u32[144,128]{1,0:T(1,128)}', space=vmem, size = 0x12000, scoped, tag = 'internal scratch']
  %s0 = inlined_call_operand.hbm [shape: f32[2,2,256], index: 0, kind: input, shape index: {}]
  %s1 = inlined_call_operand.hbm [shape: f32[2,32,256], index: 1, kind: input, shape index: {}]
  %s2 = inlined_call_operand.hbm [shape: f32[2,4,256], index: 2, kind: output, shape index: {}]
  %s3 = sld [smem:[#allocation0]]
  $region49: #{tpu_custom_call.1} parent=0
    _
  %s5 = ssub.s32 1, %s3
  %s6 = scalar_select 0, %s5, %s3
  $region1: #{tpu_custom_call.1} parent=0
    #allocation2 [shape = 'u8[2048]{0}', space=vmem, size = 0x800, scoped, tag = 'input window, operand 0']
    #allocation3 [shape = 's32[2]{0}', space=sflag, size = 0x8, scoped, tag = 'scoped memory for tpu_custom_call.1']
    #allocation4 [shape = 's32[2]{0}', space=sflag, size = 0x8, scoped, tag = 'scoped memory for tpu_custom_call.1']
    #allocation5 [shape = 'u8[65536]{0}', space=vmem, size = 0x10000, scoped, tag = 'input window, operand 1']
    #allocation6 [shape = 's32[2]{0}', space=sflag, size = 0x8, scoped, tag = 'scoped memory for tpu_custom_call.1']
    #allocation7 [shape = 'u8[4096]{0}', space=vmem, size = 0x1000, scoped, tag = 'output window, operand 0']
    %7 = vsyncpa [#allocation3], 0
    %s8 = scalar_lea.sflag [#allocation3], 1
    %9 = vsyncpa %s8, 0
    %10 = vsyncpa [#allocation6], 0
    %s11 = scalar_lea.sflag [#allocation6], 1
    %12 = vsyncpa %s11, 0
    %13 = vsyncpa [#allocation4], 0
    %s14 = scalar_lea.sflag [#allocation4], 1
    %15 = vsyncpa %s14, 0
    loop: start=0, step=1, limit=6
    $region2: #{tpu_custom_call.1} parent=1 // loop_pre_header
      _
    $region3: #{tpu_custom_call.1} parent=1 // loop_header
      %s17 = sphi 0, %s21
      %p18 = scmp.ge.s32.totalorder %s17, 6
      %s24 = sphi 0, %s36
      %s25 = sphi 0, %s32
      %s26 = sphi 0, %s24
      %s27 = sphi 0, %s25
      %s28 = sphi 0, %s26
      %s29 = sphi 0, %s27
      %s41 = sphi 0, %s43
      %s44 = sphi 0, %s41
      %s45 = sphi 0, %s44
      %s61 = sphi 0, %s45
      %s67 = sphi 0, %s69
      %s70 = sphi 0, %s67
      %s71 = sphi 0, %s70
      %s87 = sphi 0, %s71
      %s95 = sphi 0, %s97
      %s98 = sphi 0, %s95
      %s99 = sphi 0, %s98
      %s115 = sphi 0, %s99
    $region4: #{tpu_custom_call.1} parent=1 // loop_header_branch
      %20 = sbr.rel (%p18) target = $region8
    $region5: #{tpu_custom_call.1} parent=1 // loop_body
      %s22 = ssub.s32 %s17, 1
      %s23 = ssub.s32 %s17, 2
      %s30 = sadd.s32 1, %s25
      %p31 = scmp.ge.s32.totalorder %s30, 2
      %s32 = scalar_select %p31, 0, %s30
      %s33 = sadd.s32 1, %s24
      %s34 = scalar_select %p31, %s33, %s24
      %p35 = scmp.ge.s32.totalorder %s34, 2
      %s36 = scalar_select %p35, 0, %s34
      %s37 = ssub.s32 %s24, %s36
      %s38 = ssub.s32 %s25, %s32
      %s39 = sor.u32 %s37, %s38
      %p40 = scmp.eq.s32.totalorder %s39, 0
      %s42 = sadd.s32 %s41, 1
      %s43 = scalar_select %p40, %s41, %s42
      %p46 = pneg %p40
      %p47 = scmp.eq.s32.totalorder %s17, 3
      %p48 = por %p46, %p47
      %p49 = scmp.ne.s32.totalorder %s41, %s44
      %p50 = scmp.eq.s32.totalorder %s17, 0
      %p51 = por %p49, %p50
      %p52 = scmp.ne.s32.totalorder %s41, %s44
      %p53 = scmp.eq.s32.totalorder %s22, 3
      %p54 = por %p52, %p53
      %p55 = scmp.ne.s32.totalorder %s44, %s45
      %p56 = scmp.eq.s32.totalorder %s22, 0
      %p57 = por %p55, %p56
      %p58 = scmp.ne.s32.totalorder %s44, %s45
      %p59 = scmp.eq.s32.totalorder %s23, 3
      %p60 = por %p58, %p59
      %p62 = scmp.ne.s32.totalorder %s45, %s61
      %p63 = scmp.eq.s32.totalorder %s23, 0
      %p64 = por %p62, %p63
      %s65 = ssub.s32 %s24, %s36
      %p66 = scmp.eq.s32.totalorder %s65, 0
      %s68 = sadd.s32 %s67, 1
      %s69 = scalar_select %p66, %s67, %s68
      %p72 = pneg %p66
      %p73 = scmp.eq.s32.totalorder %s17, 3
      %p74 = por %p72, %p73
      %p75 = scmp.ne.s32.totalorder %s67, %s70
      %p76 = scmp.eq.s32.totalorder %s17, 0
      %p77 = por %p75, %p76
      %p78 = scmp.ne.s32.totalorder %s67, %s70
      %p79 = scmp.eq.s32.totalorder %s22, 3
      %p80 = por %p78, %p79
      %p81 = scmp.ne.s32.totalorder %s70, %s71
      %p82 = scmp.eq.s32.totalorder %s22, 0
      %p83 = por %p81, %p82
      %p84 = scmp.ne.s32.totalorder %s70, %s71
      %p85 = scmp.eq.s32.totalorder %s23, 3
      %p86 = por %p84, %p85
      %p88 = scmp.ne.s32.totalorder %s71, %s87
      %p89 = scmp.eq.s32.totalorder %s23, 0
      %p90 = por %p88, %p89
      %s91 = ssub.s32 %s24, %s36
      %s92 = ssub.s32 %s25, %s32
      %s93 = sor.u32 %s91, %s92
      %p94 = scmp.eq.s32.totalorder %s93, 0
      %s96 = sadd.s32 %s95, 1
      %s97 = scalar_select %p94, %s95, %s96
      %p100 = pneg %p94
      %p101 = scmp.eq.s32.totalorder %s17, 3
      %p102 = por %p100, %p101
      %p103 = scmp.ne.s32.totalorder %s95, %s98
      %p104 = scmp.eq.s32.totalorder %s17, 0
      %p105 = por %p103, %p104
      %p106 = scmp.ne.s32.totalorder %s95, %s98
      %p107 = scmp.eq.s32.totalorder %s22, 3
      %p108 = por %p106, %p107
      %p109 = scmp.ne.s32.totalorder %s98, %s99
      %p110 = scmp.eq.s32.totalorder %s22, 0
      %p111 = por %p109, %p110
      %p112 = scmp.ne.s32.totalorder %s98, %s99
      %p113 = scmp.eq.s32.totalorder %s23, 3
      %p114 = por %p112, %p113
      %p116 = scmp.ne.s32.totalorder %s99, %s115
      %p117 = scmp.eq.s32.totalorder %s23, 0
      %p118 = por %p116, %p117
      %p119 = scmp.le.s32.totalorder 1, %s17
      %p120 = scmp.lt.s32.totalorder %s17, 5
      %p121 = pnand %p119, %p120
      %p122 = pneg %p121
      // Predicated region
      $region9: #{tpu_custom_call.1} parent=5 // pred_check
        _
      $region10: #{tpu_custom_call.1} parent=5 // pred_check_branch
        %124 = sbr.rel (%p121) target = $region12
      $region11: #{tpu_custom_call.1} parent=5 // pred_region
        %s125 = ssub.s32 %s17, 1
      $region12: #{tpu_custom_call.1} parent=5 // pred_fallthru
        _
      %p126 = scmp.lt.s32.totalorder %s17, 4
      // Predicated region
      $region13: #{tpu_custom_call.1} parent=5 // pred_check
        %p127 = pneg %p126
      $region14: #{tpu_custom_call.1} parent=5 // pred_check_branch
        %129 = sbr.rel (%p127) target = $region16
      $region15: #{tpu_custom_call.1} parent=5 // pred_region
        // Predicated region
        $region17: #{tpu_custom_call.1} parent=15 // pred_check
          %p130 = pneg %p51
        $region18: #{tpu_custom_call.1} parent=15 // pred_check_branch
          %132 = sbr.rel (%p130) target = $region20
        $region19: #{tpu_custom_call.1} parent=15 // pred_region
          %s133 = sand.u32 %s41, 1
          %s134 = scalar_lea.sflag [#allocation3], %s133
          %s135 = sand.u32 %s41, 1
          %s136 = smul.addr %s135, 2
          %s137 = scalar_lea.vmem [#allocation2], %s136
          %s139 = ssub.s32 32, 32
          %140 = vsyncadd %s134, %s139
          %s141 = smul.addr %s24, 2
          %s142 = sadd.s32 %s25, %s141
          %s143 = smul.addr %s142, 32
          %s144 = scalar_lea.hbm %s0, %s143
          %s146 = sshll.u32 %s137, 4
          %s147 = int_to_ptr.vmem [resolvable:$true] %s146
          %149 = dma.hbm_to_vmem [thread:$0]  %s144, 32, %s147, %s134
        $region20: #{tpu_custom_call.1} parent=15 // pred_fallthru
          _
        // Predicated region
        $region21: #{tpu_custom_call.1} parent=15 // pred_check
          %p150 = pneg %p77
        $region22: #{tpu_custom_call.1} parent=15 // pred_check_branch
          %152 = sbr.rel (%p150) target = $region24
        $region23: #{tpu_custom_call.1} parent=15 // pred_region
          %s153 = sand.u32 %s67, 1
          %s154 = scalar_lea.sflag [#allocation6], %s153
          %s155 = sand.u32 %s67, 1
          %s156 = smul.addr %s155, 64
          %s157 = scalar_lea.vmem [#allocation5], %s156
          %s159 = ssub.s32 1024, 1024
          %160 = vsyncadd %s154, %s159
          %s161 = smul.addr %s24, 8
          %s162 = smul.addr %s161, 128
          %s163 = scalar_lea.hbm %s1, %s162
          %s164 = sshll.u32 %s157, 4
          %s165 = int_to_ptr.vmem [resolvable:$true] %s164
          %170 = dma.hbm_to_vmem [thread:$0]  %s163, 1024, %s165, %s154, 256, 256, 16
        $region24: #{tpu_custom_call.1} parent=15 // pred_fallthru
          _
      $region16: #{tpu_custom_call.1} parent=5 // pred_fallthru
        _
      %p171 = scmp.le.s32.totalorder 1, %s17
      %p172 = scmp.lt.s32.totalorder %s17, 5
      %p173 = pnand %p171, %p172
      %p174 = pneg %p173
      // Predicated region
      $region25: #{tpu_custom_call.1} parent=5 // pred_check
        _
      $region26: #{tpu_custom_call.1} parent=5 // pred_check_branch
        %176 = sbr.rel (%p173) target = $region28
      $region27: #{tpu_custom_call.1} parent=5 // pred_region
        %s177 = ssub.s32 %s17, 1
        %s178 = sand.u32 %s44, 1
        %s179 = scalar_lea.sflag [#allocation3], %s178
        %s180 = sand.u32 %s44, 1
        %s181 = smul.addr %s180, 2
        %s182 = scalar_lea.vmem [#allocation2], %s181
        // Predicated region
        $region29: #{tpu_custom_call.1} parent=27 // pred_check
          %p183 = pneg %p57
        $region30: #{tpu_custom_call.1} parent=27 // pred_check_branch
          %185 = sbr.rel (%p183) target = $region32
        $region31: #{tpu_custom_call.1} parent=27 // pred_region
          %186 = dma.done %s179, 32
        $region32: #{tpu_custom_call.1} parent=27 // pred_fallthru
          _
        %s187 = sand.u32 %s70, 1
        %s188 = scalar_lea.sflag [#allocation6], %s187
        %s189 = sand.u32 %s70, 1
        %s190 = smul.addr %s189, 64
        %s191 = scalar_lea.vmem [#allocation5], %s190
        // Predicated region
        $region33: #{tpu_custom_call.1} parent=27 // pred_check
          %p192 = pneg %p83
        $region34: #{tpu_custom_call.1} parent=27 // pred_check_branch
          %194 = sbr.rel (%p192) target = $region36
        $region35: #{tpu_custom_call.1} parent=27 // pred_region
          %195 = dma.done %s188, 1024
        $region36: #{tpu_custom_call.1} parent=27 // pred_fallthru
          _
        %s196 = sand.u32 %s44, 1
        %s197 = scalar_lea.sflag [#allocation3], %s196
        %s198 = sand.u32 %s44, 1
        %s199 = smul.addr %s198, 2
        %s200 = scalar_lea.vmem [#allocation2], %s199
        %p201 = pneg %p57
        %p202 = pneg %p54
        %s203 = sand.u32 %s70, 1
        %s204 = scalar_lea.sflag [#allocation6], %s203
        %s205 = sand.u32 %s70, 1
        %s206 = smul.addr %s205, 64
        %s207 = scalar_lea.vmem [#allocation5], %s206
        %p208 = pneg %p83
        %p209 = pneg %p80
        %p210 = pneg %p111
        %p211 = pneg %p108
        %s212 = sand.u32 %s98, 1
        %s213 = scalar_lea.sflag [#allocation4], %s212
        %s214 = sand.u32 %s98, 1
        %s215 = smul.addr %s214, 4
        %s216 = scalar_lea.vmem [#allocation7], %s215
        %v217 = vld [vmem:[%s182] sm:$0x3]
        %v218 = vfloor.f32 %v217
        %v219 = vsub.f32 %v217, %v218
        %v220 = vsub.f32 1.0, %v219
        %v222 = vrot.slane %v220, 1
        %v224 = vmul.f32 %v220, %v222
        %v225 = vmul.f32 %v219, %v222
        %v227 = vrot.slane %v219, 1
        %v229 = vmul.f32 %v220, %v227
        %v230 = vmul.f32 %v219, %v227
        %v231 = vmul.f32 %v218, 16.0
        %v233 = vrot.slane %v218, 7
        %v235 = vadd.f32 %v231, %v233
        %v236 = vcvt.f32.s32.to.zero.pseudo %v235
        %v237 = vld [vmem:[%s191] sm:$0xff]
        %v238 = vld [vmem:[%s191 + $0x8] sm:$0xff]
        %v239 = vld [vmem:[%s191 + $0x10] sm:$0xff]
        %v240 = vld [vmem:[%s191 + $0x18] sm:$0xff]
        %v241 = vld [vmem:[%s191 + $0x20] sm:$0xff]
        %v242 = vld [vmem:[%s191 + $0x28] sm:$0xff]
        %v243 = vld [vmem:[%s191 + $0x30] sm:$0xff]
        %v244 = vld [vmem:[%s191 + $0x38] sm:$0xff]
        %v245 = vlaneseq
        %v246 = vshrl.u32 %v245, 7
        %v247 = vadd.s32 %v246, 8
        %v248 = vadd.s32 %v246, 16
        %v249 = vadd.s32 %v246, 24
        %v250 = vadd.s32 %v246, 32
        %v251 = vadd.s32 %v246, 40
        %v252 = vadd.s32 %v246, 48
        %v253 = vadd.s32 %v246, 56
        %v254 = vadd.s32 %v246, 64
        %v255 = vadd.s32 %v246, 72
        %v256 = vadd.s32 %v246, 80
        %v257 = vadd.s32 %v246, 88
        %v258 = vadd.s32 %v246, 96
        %v259 = vadd.s32 %v246, 104
        %v260 = vadd.s32 %v246, 112
        %v261 = vadd.s32 %v246, 120
        %v262 = vadd.s32 %v246, 128
        %v263 = vadd.s32 %v246, 136
        %v264 = vadd.s32 %v246, 144
        %v265 = vadd.s32 %v246, 152
        %v266 = vadd.s32 %v246, 160
        %v267 = vadd.s32 %v246, 168
        %v268 = vadd.s32 %v246, 176
        %v269 = vadd.s32 %v246, 184
        %v270 = vadd.s32 %v246, 192
        %v271 = vadd.s32 %v246, 200
        %v272 = vadd.s32 %v246, 208
        %v273 = vadd.s32 %v246, 216
        %v274 = vadd.s32 %v246, 224
        %v275 = vadd.s32 %v246, 232
        %v276 = vadd.s32 %v246, 240
        %v277 = vadd.s32 %v246, 248
        %v278 = vlaneseq
        %v279 = vshrl.u32 %v278, 7
        %v280 = vsub.s32 1, %v279
        %v281 = vrot.slane %v236, %v280
        %vm282 = vcmp.eq.s32.totalorder %v246, %v281
        %vm283 = vcmp.eq.s32.totalorder %v247, %v281
        %vm284 = vcmp.eq.s32.totalorder %v248, %v281
        %vm285 = vcmp.eq.s32.totalorder %v249, %v281
        %vm286 = vcmp.eq.s32.totalorder %v250, %v281
        %vm287 = vcmp.eq.s32.totalorder %v251, %v281
        %vm288 = vcmp.eq.s32.totalorder %v252, %v281
        %vm289 = vcmp.eq.s32.totalorder %v253, %v281
        %vm290 = vcmp.eq.s32.totalorder %v254, %v281
        %vm291 = vcmp.eq.s32.totalorder %v255, %v281
        %vm292 = vcmp.eq.s32.totalorder %v256, %v281
        %vm293 = vcmp.eq.s32.totalorder %v257, %v281
        %vm294 = vcmp.eq.s32.totalorder %v258, %v281
        %vm295 = vcmp.eq.s32.totalorder %v259, %v281
        %vm296 = vcmp.eq.s32.totalorder %v260, %v281
        %vm297 = vcmp.eq.s32.totalorder %v261, %v281
        %vm298 = vcmp.eq.s32.totalorder %v262, %v281
        %vm299 = vcmp.eq.s32.totalorder %v263, %v281
        %vm300 = vcmp.eq.s32.totalorder %v264, %v281
        %vm301 = vcmp.eq.s32.totalorder %v265, %v281
        %vm302 = vcmp.eq.s32.totalorder %v266, %v281
        %vm303 = vcmp.eq.s32.totalorder %v267, %v281
        %vm304 = vcmp.eq.s32.totalorder %v268, %v281
        %vm305 = vcmp.eq.s32.totalorder %v269, %v281
        %vm306 = vcmp.eq.s32.totalorder %v270, %v281
        %vm307 = vcmp.eq.s32.totalorder %v271, %v281
        %vm308 = vcmp.eq.s32.totalorder %v272, %v281
        %vm309 = vcmp.eq.s32.totalorder %v273, %v281
        %vm310 = vcmp.eq.s32.totalorder %v274, %v281
        %vm311 = vcmp.eq.s32.totalorder %v275, %v281
        %vm312 = vcmp.eq.s32.totalorder %v276, %v281
        %vm313 = vcmp.eq.s32.totalorder %v277, %v281
        %v314 = vsel %vm282, 1.0, 0.0
        %v315 = vsel %vm283, 1.0, 0.0
        %v316 = vsel %vm284, 1.0, 0.0
        %v317 = vsel %vm285, 1.0, 0.0
        %v318 = vsel %vm286, 1.0, 0.0
        %v319 = vsel %vm287, 1.0, 0.0
        %v320 = vsel %vm288, 1.0, 0.0
        %v321 = vsel %vm289, 1.0, 0.0
        %v322 = vsel %vm290, 1.0, 0.0
        %v323 = vsel %vm291, 1.0, 0.0
        %v324 = vsel %vm292, 1.0, 0.0
        %v325 = vsel %vm293, 1.0, 0.0
        %v326 = vsel %vm294, 1.0, 0.0
        %v327 = vsel %vm295, 1.0, 0.0
        %v328 = vsel %vm296, 1.0, 0.0
        %v329 = vsel %vm297, 1.0, 0.0
        %v330 = vsel %vm298, 1.0, 0.0
        %v331 = vsel %vm299, 1.0, 0.0
        %v332 = vsel %vm300, 1.0, 0.0
        %v333 = vsel %vm301, 1.0, 0.0
        %v334 = vsel %vm302, 1.0, 0.0
        %v335 = vsel %vm303, 1.0, 0.0
        %v336 = vsel %vm304, 1.0, 0.0
        %v337 = vsel %vm305, 1.0, 0.0
        %v338 = vsel %vm306, 1.0, 0.0
        %v339 = vsel %vm307, 1.0, 0.0
        %v340 = vsel %vm308, 1.0, 0.0
        %v341 = vsel %vm309, 1.0, 0.0
        %v342 = vsel %vm310, 1.0, 0.0
        %v343 = vsel %vm311, 1.0, 0.0
        %v344 = vsel %vm312, 1.0, 0.0
        %v345 = vsel %vm313, 1.0, 0.0
        %346 = vmatprep.subr.mxu0 0.0
        %347 = vmatpush1.msra.mxu0 %v314
        %348 = vmatprep.subr.mxu0 0.0
        %349 = vmatpush1.msra.mxu0 %v315
        %350 = vmatprep.subr.mxu0 0.0
        %351 = vmatpush1.msra.mxu0 %v316
        %352 = vmatprep.subr.mxu0 0.0
        %353 = vmatpush1.msra.mxu0 %v317
        %354 = vmatprep.subr.mxu0 0.0
        %355 = vmatpush1.msra.mxu0 %v318
        %356 = vmatprep.subr.mxu0 0.0
        %357 = vmatpush1.msra.mxu0 %v319
        %358 = vmatprep.subr.mxu0 0.0
        %359 = vmatpush1.msra.mxu0 %v320
        %360 = vmatprep.subr.mxu0 0.0
        %361 = vmatpush1.msra.mxu0 %v321
        %362 = vmatprep.subr.mxu0 0.0
        %363 = vmatpush1.msra.mxu0 %v322
        %364 = vmatprep.subr.mxu0 0.0
        %365 = vmatpush1.msra.mxu0 %v323
        %366 = vmatprep.subr.mxu0 0.0
        %367 = vmatpush1.msra.mxu0 %v324
        %368 = vmatprep.subr.mxu0 0.0
        %369 = vmatpush1.msra.mxu0 %v325
        %370 = vmatprep.subr.mxu0 0.0
        %371 = vmatpush1.msra.mxu0 %v326
        %372 = vmatprep.subr.mxu0 0.0
        %373 = vmatpush1.msra.mxu0 %v327
        %374 = vmatprep.subr.mxu0 0.0
        %375 = vmatpush1.msra.mxu0 %v328
        %376 = vmatprep.subr.mxu0 0.0
        %377 = vmatpush1.msra.mxu0 %v329
        %378 = vmatprep.subr.mxu0 0.0
        %379 = vmatpush1.msra.mxu0 %v330
        %380 = vmatprep.subr.mxu0 0.0
        %381 = vmatpush1.msra.mxu0 %v331
        %382 = vmatprep.subr.mxu0 0.0
        %383 = vmatpush1.msra.mxu0 %v332
        %384 = vmatprep.subr.mxu0 0.0
        %385 = vmatpush1.msra.mxu0 %v333
        %386 = vmatprep.subr.mxu0 0.0
        %387 = vmatpush1.msra.mxu0 %v334
        %388 = vmatprep.subr.mxu0 0.0
        %389 = vmatpush1.msra.mxu0 %v335
        %390 = vmatprep.subr.mxu0 0.0
        %391 = vmatpush1.msra.mxu0 %v336
        %392 = vmatprep.subr.mxu0 0.0
        %393 = vmatpush1.msra.mxu0 %v337
        %394 = vmatprep.subr.mxu0 0.0
        %395 = vmatpush1.msra.mxu0 %v338
        %396 = vmatprep.subr.mxu0 0.0
        %397 = vmatpush1.msra.mxu0 %v339
        %398 = vmatprep.subr.mxu0 0.0
        %399 = vmatpush1.msra.mxu0 %v340
        %400 = vmatprep.subr.mxu0 0.0
        %401 = vmatpush1.msra.mxu0 %v341
        %402 = vmatprep.subr.mxu0 0.0
        %403 = vmatpush1.msra.mxu0 %v342
        %404 = vmatprep.subr.mxu0 0.0
        %405 = vmatpush1.msra.mxu0 %v343
        %406 = vmatprep.subr.mxu0 0.0
        %407 = vmatpush1.msra.mxu0 %v344
        %408 = vmatprep.subr.mxu0 0.0
        %409 = vmatpush1.msra.mxu0 %v345
        %410 = vmatprep.mubr.f32.mxu0 %v238
        %411 = vmatmul.mubr.f32.gmra.mrb[0].mxu0 %v237
        %v412 = vpop.f32.mrb[0].mxu0
        %v413 = vadd.f32 0.0, %v412
        %v414 = vpop.f32.mrb[0].mxu0
        %415 = vmatprep.mubr.f32.mxu0 %v240
        %416 = vmatmul.mubr.f32.gmra.mrb[0].mxu0 %v239
        %v417 = vpop.f32.mrb[0].mxu0
        %v418 = vadd.f32 0.0, %v417
        %v419 = vpop.f32.mrb[0].mxu0
        %420 = vmatprep.mubr.f32.mxu0 %v242
        %421 = vmatmul.mubr.f32.gmra.mrb[0].mxu0 %v241
        %v422 = vpop.f32.mrb[0].mxu0
        %v423 = vadd.f32 0.0, %v422
        %v424 = vpop.f32.mrb[0].mxu0
        %425 = vmatprep.mubr.f32.mxu0 %v244
        %426 = vmatmul.mubr.f32.gmra.mrb[0].mxu0 %v243
        %v427 = vpop.f32.mrb[0].mxu0
        %v428 = vadd.f32 0.0, %v427
        %v429 = vpop.f32.mrb[0].mxu0
        %430 = vdwg.mxu0
        %v431 = vlaneseq
        %v432 = vshrl.u32 %v431, 7
        %v433 = vsub.s32 0, %v432
        %v434 = vrot.slane %v224, %v433
        %v435 = vmul.f32 %v434, %v413
        %v436 = vlaneseq
        %v437 = vshrl.u32 %v436, 7
        %v438 = vsub.s32 0, %v437
        %v439 = vrot.slane %v225, %v438
        %v440 = vmul.f32 %v439, %v418
        %v441 = vadd.f32 %v435, %v440
        %v442 = vlaneseq
        %v443 = vshrl.u32 %v442, 7
        %v444 = vsub.s32 0, %v443
        %v445 = vrot.slane %v229, %v444
        %v446 = vmul.f32 %v445, %v423
        %v447 = vadd.f32 %v441, %v446
        %v448 = vlaneseq
        %v449 = vshrl.u32 %v448, 7
        %v450 = vsub.s32 0, %v449
        %v451 = vrot.slane %v230, %v450
        %v452 = vmul.f32 %v451, %v428
        %v453 = vadd.f32 %v447, %v452
        %454 = vst [vmem:[%s216] sm:$0xf] %v453
        %s455 = sand.u32 %s98, 1
        %s456 = scalar_lea.sflag [#allocation4], %s455
        %s457 = sand.u32 %s98, 1
        %s458 = smul.addr %s457, 4
        %s459 = scalar_lea.vmem [#allocation7], %s458
        // Predicated region
        $region37: #{tpu_custom_call.1} parent=27 // pred_check
          %p460 = pneg %p108
        $region38: #{tpu_custom_call.1} parent=27 // pred_check_branch
          %462 = sbr.rel (%p460) target = $region40
        $region39: #{tpu_custom_call.1} parent=27 // pred_region
          %s464 = ssub.s32 64, 64
          %465 = vsyncadd %s456, %s464
          %s466 = smul.addr %s26, 2
          %s467 = sadd.s32 %s27, %s466
          %s468 = smul.addr %s467, 64
          %s469 = scalar_lea.hbm %s2, %s468
          %s471 = sshll.u32 %s459, 4
          %s472 = int_to_ptr.vmem [resolvable:$true] %s471
          %474 = dma.vmem_to_hbm [thread:$0]  %s472, 64, %s469, %s456
        $region40: #{tpu_custom_call.1} parent=27 // pred_fallthru
          _
      $region28: #{tpu_custom_call.1} parent=5 // pred_fallthru
        _
      %p475 = scmp.le.s32.totalorder 2, %s17
      // Predicated region
      $region41: #{tpu_custom_call.1} parent=5 // pred_check
        %p476 = pneg %p475
      $region42: #{tpu_custom_call.1} parent=5 // pred_check_branch
        %478 = sbr.rel (%p476) target = $region44
      $region43: #{tpu_custom_call.1} parent=5 // pred_region
        %s479 = ssub.s32 %s17, 2
        // Predicated region
        $region45: #{tpu_custom_call.1} parent=43 // pred_check
          %p480 = pneg %p114
        $region46: #{tpu_custom_call.1} parent=43 // pred_check_branch
          %482 = sbr.rel (%p480) target = $region48
        $region47: #{tpu_custom_call.1} parent=43 // pred_region
          %s483 = sand.u32 %s99, 1
          %s484 = scalar_lea.sflag [#allocation4], %s483
          %s485 = sand.u32 %s99, 1
          %s486 = smul.addr %s485, 4
          %s487 = scalar_lea.vmem [#allocation7], %s486
          %488 = dma.done %s484, 64
        $region48: #{tpu_custom_call.1} parent=43 // pred_fallthru
          _
      $region44: #{tpu_custom_call.1} parent=5 // pred_fallthru
        _
    $region6: #{tpu_custom_call.1} parent=1 // loop_footer
      %s21 = sadd.s32 1, %s17
    $region7: #{tpu_custom_call.1} parent=1 // loop_footer_branch
      %16 = sbr.rel target = $region3
    $region8: #{tpu_custom_call.1} parent=1 // loop_exit
      _
    %489 = vsyncpa [#allocation3], 1
    %s490 = scalar_lea.sflag [#allocation3], 1
    %491 = vsyncpa %s490, 1
    %492 = vsyncpa [#allocation6], 1
    %s493 = scalar_lea.sflag [#allocation6], 1
    %494 = vsyncpa %s493, 1
    %495 = vsyncpa [#allocation4], 1
    %s496 = scalar_lea.sflag [#allocation4], 1
    %497 = vsyncpa %s496, 1

</llo_original>
